<compile_context>
chip_gen: v6e
topology: v6e:2x2x1
jax: 0.10.0
libtpu: 0.0.40
codegen_flags: <defaults>
</compile_context>

<pallas_src>
import jax
import jax.numpy as jnp
from jax.experimental import pallas as pl
from jax.experimental.pallas import tpu as pltpu


def _make_kernel(*, Cin, Cout, F_lab, Hid, W, S, IMG, GUARD, HEAD, B2_ROW):
    K = 9 * Cin
    N = IMG * S

    def kernel(img_ref, lab_ref, slab_ref, mask_ref, out_ref, col_ref):
        # img_ref : (Cin, GUARD + IMG*S + GUARD)   IMG images packed along lanes
        # lab_ref : (F_lab, IMG)
        # slab_ref: (ROWS, WD)                     resident packed parameters
        # mask_ref: (9, IMG*S)                     resident per-tap validity masks
        # out_ref : (1, IMG)
        # col_ref : (9*Cin, IMG*S)                 VMEM im2col scratch

        # ---- unpack the resident packed parameter slab -----------------------
        w_conv = slab_ref[0:Cout, 0:K]                           # (Cout, 9*Cin)
        cb     = slab_ref[0:Cout, K:K + 1]                       # (Cout, 1)
        w1a    = slab_ref[HEAD:HEAD + Hid, 0:Cout]               # (Hid, Cout)
        w1b    = slab_ref[HEAD:HEAD + Hid, Cout:Cout + F_lab]    # (Hid, F_lab)
        b1     = slab_ref[HEAD:HEAD + Hid, Cout + F_lab:Cout + F_lab + 1]
        w2     = slab_ref[HEAD:HEAD + Hid, Cout + F_lab + 1:Cout + F_lab + 2]
        b2     = slab_ref[B2_ROW:B2_ROW + 1, 0:1]                # (1, 1)

        # ---- in-kernel im2col: 9 shifted + masked tap slices, staged once ----
        for k in range(9):
            dy, dx = k // 3 - 1, k % 3 - 1
            start = GUARD + dy * W + dx                          # static int
            sl = img_ref[:, start:start + N]                     # (Cin, IMG*S)
            if (dy, dx) != (0, 0):
                sl = sl * mask_ref[k:k + 1, :]                   # zero invalid taps
            col_ref[k * Cin:(k + 1) * Cin, :] = sl

        # ---- Conv2d(3x3, SAME) + bias + ReLU as ONE fused K=36 MXU matmul ----
        conv = jnp.maximum(
            jnp.dot(w_conv, col_ref[...], preferred_element_type=jnp.float32)
            + cb, 0.0)                                           # (Cout, IMG*S)

        # ---- AdaptiveAvgPool2d(1) + Flatten: per-image aligned lane reduce ---
        cols = [jnp.sum(conv[:, i * S:(i + 1) * S], axis=1, keepdims=True)
                for i in range(IMG)]
        feat = jnp.concatenate(cols, axis=1) * (1.0 / S)         # (Cout, IMG)

        # ---- torch.cat([feat, lab], 1) + Linear + ReLU: split matmul ---------
        h = jnp.maximum(
            jnp.dot(w1a, feat, preferred_element_type=jnp.float32)
            + jnp.dot(w1b, lab_ref[...], preferred_element_type=jnp.float32)
            + b1, 0.0)                                           # (Hid, IMG)

        # ---- final Linear(Hid -> 1): VPU multiply + sublane reduce -----------
        out_ref[...] = jnp.sum(h * w2, axis=0, keepdims=True) + b2   # (1, IMG)

    return kernel


def combined_forward(image_nchw, lab_data, params, img_per_step=None):
    """image_nchw: (B, Cin, H, W) f32; lab_data: (B, F_lab) f32; params: PyTorch-layout."""
    B, Cin, H, W = image_nchw.shape
    F_lab = lab_data.shape[1]
    conv_w = params["conv_w"]              # (Cout, Cin, 3, 3)  OIHW
    conv_b = params["conv_b"]              # (Cout,)
    w1, b1 = params["w1"], params["b1"]    # (Cout+F_lab, Hid), (Hid,)
    w2, b2 = params["w2"], params["b2"]    # (Hid, 1), (1,)
    Cout, Hid = conv_w.shape[0], w1.shape[1]

    S = H * W
    IMG = max(1, min(B, 32)) if img_per_step is None else max(1, min(img_per_step, B))
    G = -(-B // IMG)                       # number of grid steps (image groups)
    B_pad = G * IMG
    N = IMG * S
    GUARD = 128                            # lane-aligned zero guard on both ends
    Wlanes = GUARD + N + GUARD

    # ---- cheap host glue: NCHW -> per-group lane-packed flat spatial ---------
    x = image_nchw.reshape(B, Cin, S).astype(jnp.float32)
    if B_pad != B:
        x = jnp.pad(x, ((0, B_pad - B), (0, 0), (0, 0)))
    xg = x.reshape(G, IMG, Cin, S).transpose(0, 2, 1, 3).reshape(G, Cin, N)
    xg = jnp.pad(xg, ((0, 0), (0, 0), (GUARD, GUARD)))           # (G, Cin, Wlanes)

    lab = lab_data.astype(jnp.float32)
    if B_pad != B:
        lab = jnp.pad(lab, ((0, B_pad - B), (0, 0)))
    labg = lab.reshape(G, IMG, F_lab).transpose(0, 2, 1)         # (G, F_lab, IMG)

    # ---- pack ALL small parameters into one resident slab --------------------
    K = 9 * Cin
    HEAD = ((Cout + 7) // 8) * 8
    B2_ROW = HEAD + Hid
    ROWS = ((B2_ROW + 1 + 7) // 8) * 8
    WD = ((max(K + 1, Cout + F_lab + 2) + 127) // 128) * 128

    w_all = jnp.transpose(conv_w, (0, 2, 3, 1)).reshape(Cout, K)  # (kh, kw, ci) order
    w1T = jnp.asarray(w1, jnp.float32).T                          # (Hid, Cout+F_lab)
    slab = jnp.zeros((ROWS, WD), jnp.float32)
    slab = slab.at[0:Cout, 0:K].set(w_all)
    slab = slab.at[0:Cout, K:K + 1].set(conv_b.reshape(Cout, 1))
    slab = slab.at[HEAD:HEAD + Hid, 0:Cout].set(w1T[:, 0:Cout])
    slab = slab.at[HEAD:HEAD + Hid, Cout:Cout + F_lab].set(w1T[:, Cout:Cout + F_lab])
    slab = slab.at[HEAD:HEAD + Hid, Cout + F_lab:Cout + F_lab + 1].set(b1.reshape(Hid, 1))
    slab = slab.at[HEAD:HEAD + Hid, Cout + F_lab + 1:Cout + F_lab + 2].set(
        jnp.asarray(w2, jnp.float32).reshape(Hid, 1))
    slab = slab.at[B2_ROW:B2_ROW + 1, 0:1].set(
        jnp.asarray(b2, jnp.float32).reshape(1, 1))

    # ---- 9 per-tap validity masks (zero-padding semantics), tiled over IMG ---
    row = jnp.arange(S) // W
    col = jnp.arange(S) % W
    mask_rows = []
    for k in range(9):
        dy, dx = k // 3 - 1, k % 3 - 1
        ok = (row + dy >= 0) & (row + dy < H) & (col + dx >= 0) & (col + dx < W)
        mask_rows.append(ok.astype(jnp.float32))
    masks = jnp.tile(jnp.stack(mask_rows), (1, IMG))              # (9, IMG*S)

    kernel = _make_kernel(Cin=Cin, Cout=Cout, F_lab=F_lab, Hid=Hid, W=W, S=S,
                          IMG=IMG, GUARD=GUARD, HEAD=HEAD, B2_ROW=B2_ROW)

    flops = int(B_pad * (2 * Cout * K * S + 2 * Hid * (Cout + F_lab) + 2 * Hid))
    bytes_accessed = int(4 * (xg.size + labg.size + slab.size + masks.size + B_pad))

    out = pl.pallas_call(
        kernel,
        out_shape=jax.ShapeDtypeStruct((G, 1, IMG), jnp.float32),
        grid=(G,),
        in_specs=[
            pl.BlockSpec((None, Cin, Wlanes), lambda g: (g, 0, 0)),   # image group
            pl.BlockSpec((None, F_lab, IMG), lambda g: (g, 0, 0)),    # lab group
            pl.BlockSpec((ROWS, WD), lambda g: (0, 0)),               # resident params
            pl.BlockSpec((9, N), lambda g: (0, 0)),                   # resident tap masks
        ],
        out_specs=pl.BlockSpec((None, 1, IMG), lambda g: (g, 0, 0)),
        scratch_shapes=[pltpu.VMEM((K, N), jnp.float32)],             # im2col scratch
        compiler_params=pltpu.CompilerParams(
            dimension_semantics=("parallel",)),
        cost_estimate=pl.CostEstimate(
            flops=flops, transcendentals=0, bytes_accessed=bytes_accessed),
    )(xg, labg, slab, masks)

    return out.reshape(B_pad, 1)[:B]


if __name__ == "__main__":
    key = jax.random.PRNGKey(0)
    ks = jax.random.split(key, 8)

    B, Cin, H, W = 2, 4, 16, 16
    Cout, F_lab, Hid = 8, 5, 32

    image = jax.random.normal(ks[0], (B, Cin, H, W), jnp.float32)
    lab = jax.random.normal(ks[1], (B, F_lab), jnp.float32)

    conv_w = jax.random.normal(ks[2], (Cout, Cin, 3, 3), jnp.float32) * 0.1
    conv_b = jax.random.normal(ks[3], (Cout,), jnp.float32) * 0.1
    w1 = jax.random.normal(ks[4], (Cout + F_lab, Hid), jnp.float32) * 0.1
    b1 = jax.random.normal(ks[5], (Hid,), jnp.float32) * 0.1
    w2 = jax.random.normal(ks[6], (Hid, 1), jnp.float32) * 0.1
    b2 = jax.random.normal(ks[7], (1,), jnp.float32) * 0.1

    params = dict(conv_w=conv_w, conv_b=conv_b, w1=w1, b1=b1, w2=w2, b2=b2)

    out = combined_forward(image, lab, params)
    jax.block_until_ready(out)

    # Pure-JAX reference mirroring the PyTorch CombinedModel forward.
    ref_conv = jax.lax.conv_general_dilated(
        image, conv_w, (1, 1), "SAME",
        dimension_numbers=("NCHW", "OIHW", "NCHW"))
    ref_feat = jnp.mean(
        jnp.maximum(ref_conv + conv_b.reshape(1, Cout, 1, 1), 0.0), axis=(2, 3))
    ref_comb = jnp.concatenate([ref_feat, lab], axis=1)          # torch.cat(dim=1)
    ref_h = jnp.maximum(ref_comb @ w1 + b1, 0.0)
    ref_out = ref_h @ w2 + b2
    assert out.shape == ref_out.shape
    assert jnp.allclose(out, ref_out, atol=1e-4, rtol=1e-4), "mismatch vs reference"

    print("KERNEL_OK")
</pallas_src>

<mosaic_0001>
module attributes {stable_mosaic.version = 11 : i64} {
  func.func @kernel(%arg0: i32, %arg1: memref<1x4x768xf32, #tpu.memory_space<vmem>>, %arg2: memref<1x5x2xf32, #tpu.memory_space<vmem>>, %arg3: memref<48x128xf32, #tpu.memory_space<vmem>>, %arg4: memref<9x512xf32, #tpu.memory_space<vmem>>, %arg5: memref<1x1x2xf32, #tpu.memory_space<vmem>>, %arg6: memref<36x512xf32, #tpu.memory_space<vmem>>) attributes {dimension_semantics = [#tpu.dimension_semantics<parallel>], iteration_bounds = array<i64: 1>, scalar_prefetch = 0 : i64, scratch_operands = 1 : i64, tpu.core_type = #tpu.core_type<tc>, window_params = [{transform_indices = @transform_0, window_bounds = array<i64: 1, 4, 768>}, {transform_indices = @transform_1, window_bounds = array<i64: 1, 5, 2>}, {pipeline_mode = #tpu.pipeline_mode<synchronous>, transform_indices = @transform_2, window_bounds = array<i64: 48, 128>}, {pipeline_mode = #tpu.pipeline_mode<synchronous>, transform_indices = @transform_3, window_bounds = array<i64: 9, 512>}, {transform_indices = @transform_4, window_bounds = array<i64: 1, 1, 2>}]} {
    %c0 = arith.constant 0 : index
    %c0_0 = arith.constant 0 : index
    %0 = vector.load %arg3[%c0, %c0_0] : memref<48x128xf32, #tpu.memory_space<vmem>>, vector<8x36xf32>
    %c0_1 = arith.constant 0 : index
    %c36 = arith.constant 36 : index
    %1 = vector.load %arg3[%c0_1, %c36] : memref<48x128xf32, #tpu.memory_space<vmem>>, vector<8x1xf32>
    %c8 = arith.constant 8 : index
    %c0_2 = arith.constant 0 : index
    %2 = vector.load %arg3[%c8, %c0_2] : memref<48x128xf32, #tpu.memory_space<vmem>>, vector<32x8xf32>
    %c8_3 = arith.constant 8 : index
    %c8_4 = arith.constant 8 : index
    %3 = vector.load %arg3[%c8_3, %c8_4] : memref<48x128xf32, #tpu.memory_space<vmem>>, vector<32x5xf32>
    %c8_5 = arith.constant 8 : index
    %c13 = arith.constant 13 : index
    %4 = vector.load %arg3[%c8_5, %c13] : memref<48x128xf32, #tpu.memory_space<vmem>>, vector<32x1xf32>
    %c8_6 = arith.constant 8 : index
    %c14 = arith.constant 14 : index
    %5 = vector.load %arg3[%c8_6, %c14] : memref<48x128xf32, #tpu.memory_space<vmem>>, vector<32x1xf32>
    %c40 = arith.constant 40 : index
    %c0_7 = arith.constant 0 : index
    %6 = vector.load %arg3[%c40, %c0_7] : memref<48x128xf32, #tpu.memory_space<vmem>>, vector<1x1xf32>
    %c0_8 = arith.constant 0 : index
    %c0_9 = arith.constant 0 : index
    %c111 = arith.constant 111 : index
    %7 = vector.load %arg1[%c0_8, %c0_9, %c111] : memref<1x4x768xf32, #tpu.memory_space<vmem>>, vector<1x4x512xf32>
    %8 = vector.shape_cast %7 : vector<1x4x512xf32> to vector<4x512xf32>
    %c0_10 = arith.constant 0 : index
    %c0_11 = arith.constant 0 : index
    %9 = vector.load %arg4[%c0_10, %c0_11] : memref<9x512xf32, #tpu.memory_space<vmem>>, vector<1x512xf32>
    %10 = vector.broadcast %9 : vector<1x512xf32> to vector<4x512xf32>
    %11 = arith.mulf %8, %10 : vector<4x512xf32>
    %c0_12 = arith.constant 0 : index
    %c0_13 = arith.constant 0 : index
    %12 = vector.load %arg6[%c0_12, %c0_13] : memref<36x512xf32, #tpu.memory_space<vmem>>, vector<4x512xf32>
    tpu.vector_store %arg6[%c0_12, %c0_13], %11 {strides = array<i32>} : memref<36x512xf32, #tpu.memory_space<vmem>>, vector<4x512xf32>,
    %c0_14 = arith.constant 0 : index
    %c0_15 = arith.constant 0 : index
    %c112 = arith.constant 112 : index
    %13 = vector.load %arg1[%c0_14, %c0_15, %c112] : memref<1x4x768xf32, #tpu.memory_space<vmem>>, vector<1x4x512xf32>
    %14 = vector.shape_cast %13 : vector<1x4x512xf32> to vector<4x512xf32>
    %c1 = arith.constant 1 : index
    %c0_16 = arith.constant 0 : index
    %15 = vector.load %arg4[%c1, %c0_16] : memref<9x512xf32, #tpu.memory_space<vmem>>, vector<1x512xf32>
    %16 = vector.broadcast %15 : vector<1x512xf32> to vector<4x512xf32>
    %17 = arith.mulf %14, %16 : vector<4x512xf32>
    %c4 = arith.constant 4 : index
    %c0_17 = arith.constant 0 : index
    %18 = vector.load %arg6[%c4, %c0_17] : memref<36x512xf32, #tpu.memory_space<vmem>>, vector<4x512xf32>
    tpu.vector_store %arg6[%c4, %c0_17], %17 {strides = array<i32>} : memref<36x512xf32, #tpu.memory_space<vmem>>, vector<4x512xf32>,
    %c0_18 = arith.constant 0 : index
    %c0_19 = arith.constant 0 : index
    %c113 = arith.constant 113 : index
    %19 = vector.load %arg1[%c0_18, %c0_19, %c113] : memref<1x4x768xf32, #tpu.memory_space<vmem>>, vector<1x4x512xf32>
    %20 = vector.shape_cast %19 : vector<1x4x512xf32> to vector<4x512xf32>
    %c2 = arith.constant 2 : index
    %c0_20 = arith.constant 0 : index
    %21 = vector.load %arg4[%c2, %c0_20] : memref<9x512xf32, #tpu.memory_space<vmem>>, vector<1x512xf32>
    %22 = vector.broadcast %21 : vector<1x512xf32> to vector<4x512xf32>
    %23 = arith.mulf %20, %22 : vector<4x512xf32>
    %c8_21 = arith.constant 8 : index
    %c0_22 = arith.constant 0 : index
    %24 = vector.load %arg6[%c8_21, %c0_22] : memref<36x512xf32, #tpu.memory_space<vmem>>, vector<4x512xf32>
    tpu.vector_store %arg6[%c8_21, %c0_22], %23 {strides = array<i32>} : memref<36x512xf32, #tpu.memory_space<vmem>>, vector<4x512xf32>,
    %c0_23 = arith.constant 0 : index
    %c0_24 = arith.constant 0 : index
    %c127 = arith.constant 127 : index
    %25 = vector.load %arg1[%c0_23, %c0_24, %c127] : memref<1x4x768xf32, #tpu.memory_space<vmem>>, vector<1x4x512xf32>
    %26 = vector.shape_cast %25 : vector<1x4x512xf32> to vector<4x512xf32>
    %c3 = arith.constant 3 : index
    %c0_25 = arith.constant 0 : index
    %27 = vector.load %arg4[%c3, %c0_25] : memref<9x512xf32, #tpu.memory_space<vmem>>, vector<1x512xf32>
    %28 = vector.broadcast %27 : vector<1x512xf32> to vector<4x512xf32>
    %29 = arith.mulf %26, %28 : vector<4x512xf32>
    %c12 = arith.constant 12 : index
    %c0_26 = arith.constant 0 : index
    %30 = vector.load %arg6[%c12, %c0_26] : memref<36x512xf32, #tpu.memory_space<vmem>>, vector<4x512xf32>
    tpu.vector_store %arg6[%c12, %c0_26], %29 {strides = array<i32>} : memref<36x512xf32, #tpu.memory_space<vmem>>, vector<4x512xf32>,
    %c0_27 = arith.constant 0 : index
    %c0_28 = arith.constant 0 : index
    %c128 = arith.constant 128 : index
    %31 = vector.load %arg1[%c0_27, %c0_28, %c128] : memref<1x4x768xf32, #tpu.memory_space<vmem>>, vector<1x4x512xf32>
    %32 = vector.shape_cast %31 : vector<1x4x512xf32> to vector<4x512xf32>
    %c16 = arith.constant 16 : index
    %c0_29 = arith.constant 0 : index
    %33 = vector.load %arg6[%c16, %c0_29] : memref<36x512xf32, #tpu.memory_space<vmem>>, vector<4x512xf32>
    tpu.vector_store %arg6[%c16, %c0_29], %32 {strides = array<i32>} : memref<36x512xf32, #tpu.memory_space<vmem>>, vector<4x512xf32>,
    %c0_30 = arith.constant 0 : index
    %c0_31 = arith.constant 0 : index
    %c129 = arith.constant 129 : index
    %34 = vector.load %arg1[%c0_30, %c0_31, %c129] : memref<1x4x768xf32, #tpu.memory_space<vmem>>, vector<1x4x512xf32>
    %35 = vector.shape_cast %34 : vector<1x4x512xf32> to vector<4x512xf32>
    %c5 = arith.constant 5 : index
    %c0_32 = arith.constant 0 : index
    %36 = vector.load %arg4[%c5, %c0_32] : memref<9x512xf32, #tpu.memory_space<vmem>>, vector<1x512xf32>
    %37 = vector.broadcast %36 : vector<1x512xf32> to vector<4x512xf32>
    %38 = arith.mulf %35, %37 : vector<4x512xf32>
    %c20 = arith.constant 20 : index
    %c0_33 = arith.constant 0 : index
    %39 = vector.load %arg6[%c20, %c0_33] : memref<36x512xf32, #tpu.memory_space<vmem>>, vector<4x512xf32>
    tpu.vector_store %arg6[%c20, %c0_33], %38 {strides = array<i32>} : memref<36x512xf32, #tpu.memory_space<vmem>>, vector<4x512xf32>,
    %c0_34 = arith.constant 0 : index
    %c0_35 = arith.constant 0 : index
    %c143 = arith.constant 143 : index
    %40 = vector.load %arg1[%c0_34, %c0_35, %c143] : memref<1x4x768xf32, #tpu.memory_space<vmem>>, vector<1x4x512xf32>
    %41 = vector.shape_cast %40 : vector<1x4x512xf32> to vector<4x512xf32>
    %c6 = arith.constant 6 : index
    %c0_36 = arith.constant 0 : index
    %42 = vector.load %arg4[%c6, %c0_36] : memref<9x512xf32, #tpu.memory_space<vmem>>, vector<1x512xf32>
    %43 = vector.broadcast %42 : vector<1x512xf32> to vector<4x512xf32>
    %44 = arith.mulf %41, %43 : vector<4x512xf32>
    %c24 = arith.constant 24 : index
    %c0_37 = arith.constant 0 : index
    %45 = vector.load %arg6[%c24, %c0_37] : memref<36x512xf32, #tpu.memory_space<vmem>>, vector<4x512xf32>
    tpu.vector_store %arg6[%c24, %c0_37], %44 {strides = array<i32>} : memref<36x512xf32, #tpu.memory_space<vmem>>, vector<4x512xf32>,
    %c0_38 = arith.constant 0 : index
    %c0_39 = arith.constant 0 : index
    %c144 = arith.constant 144 : index
    %46 = vector.load %arg1[%c0_38, %c0_39, %c144] : memref<1x4x768xf32, #tpu.memory_space<vmem>>, vector<1x4x512xf32>
    %47 = vector.shape_cast %46 : vector<1x4x512xf32> to vector<4x512xf32>
    %c7 = arith.constant 7 : index
    %c0_40 = arith.constant 0 : index
    %48 = vector.load %arg4[%c7, %c0_40] : memref<9x512xf32, #tpu.memory_space<vmem>>, vector<1x512xf32>
    %49 = vector.broadcast %48 : vector<1x512xf32> to vector<4x512xf32>
    %50 = arith.mulf %47, %49 : vector<4x512xf32>
    %c28 = arith.constant 28 : index
    %c0_41 = arith.constant 0 : index
    %51 = vector.load %arg6[%c28, %c0_41] : memref<36x512xf32, #tpu.memory_space<vmem>>, vector<4x512xf32>
    tpu.vector_store %arg6[%c28, %c0_41], %50 {strides = array<i32>} : memref<36x512xf32, #tpu.memory_space<vmem>>, vector<4x512xf32>,
    %c0_42 = arith.constant 0 : index
    %c0_43 = arith.constant 0 : index
    %c145 = arith.constant 145 : index
    %52 = vector.load %arg1[%c0_42, %c0_43, %c145] : memref<1x4x768xf32, #tpu.memory_space<vmem>>, vector<1x4x512xf32>
    %53 = vector.shape_cast %52 : vector<1x4x512xf32> to vector<4x512xf32>
    %c8_44 = arith.constant 8 : index
    %c0_45 = arith.constant 0 : index
    %54 = vector.load %arg4[%c8_44, %c0_45] : memref<9x512xf32, #tpu.memory_space<vmem>>, vector<1x512xf32>
    %55 = vector.broadcast %54 : vector<1x512xf32> to vector<4x512xf32>
    %56 = arith.mulf %53, %55 : vector<4x512xf32>
    %c32 = arith.constant 32 : index
    %c0_46 = arith.constant 0 : index
    %57 = vector.load %arg6[%c32, %c0_46] : memref<36x512xf32, #tpu.memory_space<vmem>>, vector<4x512xf32>
    tpu.vector_store %arg6[%c32, %c0_46], %56 {strides = array<i32>} : memref<36x512xf32, #tpu.memory_space<vmem>>, vector<4x512xf32>,
    %c0_47 = arith.constant 0 : index
    %c0_48 = arith.constant 0 : index
    %58 = vector.load %arg6[%c0_47, %c0_48] : memref<36x512xf32, #tpu.memory_space<vmem>>, vector<36x512xf32>
    %cst = arith.constant dense<0.000000e+00> : vector<8x512xf32>
    %59 = tpu.matmul %0, %58, %cst {dimension_numbers = #tpu.dot_dimension_numbers<[1], [0], [0], [1], [0, 0, 1, 1], [], []>} : vector<8x36xf32>, vector<36x512xf32>, vector<8x512xf32> -> vector<8x512xf32>
    %60 = vector.broadcast %1 : vector<8x1xf32> to vector<8x512xf32>
    %61 = arith.addf %59, %60 : vector<8x512xf32>
    %cst_49 = arith.constant 0.000000e+00 : f32
    %62 = vector.broadcast %cst_49 : f32 to vector<8x512xf32>
    %63 = arith.maximumf %61, %62 : vector<8x512xf32>
    %64 = vector.extract_strided_slice %63 {offsets = [0, 0], sizes = [8, 256], strides = [1, 1]} : vector<8x512xf32> to vector<8x256xf32>
    %cst_50 = arith.constant dense<0.000000e+00> : vector<8xf32>
    %65 = vector.multi_reduction <add>, %64, %cst_50 [1] : vector<8x256xf32> to vector<8xf32>
    %66 = vector.shape_cast %65 : vector<8xf32> to vector<8x1xf32>
    %67 = vector.extract_strided_slice %63 {offsets = [0, 256], sizes = [8, 256], strides = [1, 1]} : vector<8x512xf32> to vector<8x256xf32>
    %cst_51 = arith.constant dense<0.000000e+00> : vector<8xf32>
    %68 = vector.multi_reduction <add>, %67, %cst_51 [1] : vector<8x256xf32> to vector<8xf32>
    %69 = vector.shape_cast %68 : vector<8xf32> to vector<8x1xf32>
    %70 = tpu.concatenate %66, %69 in 1 : vector<8x1xf32>, vector<8x1xf32> -> vector<8x2xf32>
    %cst_52 = arith.constant 3.906250e-03 : f32
    %71 = vector.broadcast %cst_52 : f32 to vector<8x2xf32>
    %72 = arith.mulf %70, %71 : vector<8x2xf32>
    %cst_53 = arith.constant dense<0.000000e+00> : vector<32x2xf32>
    %73 = tpu.matmul %2, %72, %cst_53 {dimension_numbers = #tpu.dot_dimension_numbers<[1], [0], [0], [1], [0, 0, 1, 1], [], []>} : vector<32x8xf32>, vector<8x2xf32>, vector<32x2xf32> -> vector<32x2xf32>
    %c0_54 = arith.constant 0 : index
    %c0_55 = arith.constant 0 : index
    %c0_56 = arith.constant 0 : index
    %74 = vector.load %arg2[%c0_54, %c0_55, %c0_56] : memref<1x5x2xf32, #tpu.memory_space<vmem>>, vector<1x5x2xf32>
    %75 = vector.shape_cast %74 : vector<1x5x2xf32> to vector<5x2xf32>
    %cst_57 = arith.constant dense<0.000000e+00> : vector<32x2xf32>
    %76 = tpu.matmul %3, %75, %cst_57 {dimension_numbers = #tpu.dot_dimension_numbers<[1], [0], [0], [1], [0, 0, 1, 1], [], []>} : vector<32x5xf32>, vector<5x2xf32>, vector<32x2xf32> -> vector<32x2xf32>
    %77 = arith.addf %73, %76 : vector<32x2xf32>
    %78 = vector.broadcast %4 : vector<32x1xf32> to vector<32x2xf32>
    %79 = arith.addf %77, %78 : vector<32x2xf32>
    %cst_58 = arith.constant 0.000000e+00 : f32
    %80 = vector.broadcast %cst_58 : f32 to vector<32x2xf32>
    %81 = arith.maximumf %79, %80 : vector<32x2xf32>
    %82 = vector.broadcast %5 : vector<32x1xf32> to vector<32x2xf32>
    %83 = arith.mulf %81, %82 : vector<32x2xf32>
    %cst_59 = arith.constant dense<0.000000e+00> : vector<2xf32>
    %84 = vector.multi_reduction <add>, %83, %cst_59 [0] : vector<32x2xf32> to vector<2xf32>
    %85 = vector.shape_cast %84 : vector<2xf32> to vector<1x2xf32>
    %86 = vector.broadcast %6 : vector<1x1xf32> to vector<1x2xf32>
    %87 = arith.addf %85, %86 : vector<1x2xf32>
    %c0_60 = arith.constant 0 : index
    %c0_61 = arith.constant 0 : index
    %c0_62 = arith.constant 0 : index
    %88 = vector.load %arg5[%c0_60, %c0_61, %c0_62] : memref<1x1x2xf32, #tpu.memory_space<vmem>>, vector<1x1x2xf32>
    %89 = vector.shape_cast %88 : vector<1x1x2xf32> to vector<1x2xf32>
    %90 = vector.shape_cast %87 : vector<1x2xf32> to vector<1x1x2xf32>
    tpu.vector_store %arg5[%c0_60, %c0_61, %c0_62], %90 {strides = array<i32>} : memref<1x1x2xf32, #tpu.memory_space<vmem>>, vector<1x1x2xf32>,
    return
  }
  func.func @transform_0(%arg0: i32) -> (i32, i32, i32) {
    %c0_i32 = arith.constant 0 : i32
    %c0_i32_0 = arith.constant 0 : i32
    %c0_i32_1 = arith.constant 0 : i32
    return %arg0, %c0_i32, %c0_i32_0 : i32, i32, i32
  }
  func.func @transform_1(%arg0: i32) -> (i32, i32, i32) {
    %c0_i32 = arith.constant 0 : i32
    %c0_i32_0 = arith.constant 0 : i32
    %c0_i32_1 = arith.constant 0 : i32
    return %arg0, %c0_i32, %c0_i32_0 : i32, i32, i32
  }
  func.func @transform_2(%arg0: i32) -> (i32, i32) {
    %c0_i32 = arith.constant 0 : i32
    %c0_i32_0 = arith.constant 0 : i32
    %c0_i32_1 = arith.constant 0 : i32
    return %c0_i32, %c0_i32_0 : i32, i32
  }
  func.func @transform_3(%arg0: i32) -> (i32, i32) {
    %c0_i32 = arith.constant 0 : i32
    %c0_i32_0 = arith.constant 0 : i32
    %c0_i32_1 = arith.constant 0 : i32
    return %c0_i32, %c0_i32_0 : i32, i32
  }
  func.func @transform_4(%arg0: i32) -> (i32, i32, i32) {
    %c0_i32 = arith.constant 0 : i32
    %c0_i32_0 = arith.constant 0 : i32
    %c0_i32_1 = arith.constant 0 : i32
    return %arg0, %c0_i32, %c0_i32_0 : i32, i32, i32
  }
}

</mosaic_0001>

<llo_original>
// kernel: tpu_custom_call.1
$region0: #{tpu_custom_call.1}
  #allocation0 [shape = 'u32[]', space=smem, size = 0x4, offset = 0x4, fixed_abs, tag = 'smem constant byte address 0x4 - core index']
  #allocation1 [shape = 'u32[144,128]{1,0:T(1,128)}', space=vmem, size = 0x12000, scoped, tag = 'internal scratch']
  #allocation2 [shape = 'f32[36,512]{1,0:T(8,128)}', space=vmem, size = 0x14000, scoped, tag = 'scratch operand']
  %s0 = inlined_call_operand.hbm [shape: f32[1,4,768], index: 0, kind: input, shape index: {}]
  %s1 = inlined_call_operand.vmem [shape: f32[1,5,2], index: 1, kind: input, shape index: {}]
  %s2 = inlined_call_operand.hbm [shape: f32[48,128], index: 2, kind: input, shape index: {}]
  %s3 = inlined_call_operand.hbm [shape: f32[9,512], index: 3, kind: input, shape index: {}]
  %s4 = inlined_call_operand.hbm [shape: f32[1,1,2], index: 4, kind: output, shape index: {}]
  %s5 = sld [smem:[#allocation0]]
  $region38: #{tpu_custom_call.1} parent=0
    _
  %s7 = ssub.s32 1, %s5
  %s8 = scalar_select 0, %s7, %s5
  $region1: #{tpu_custom_call.1} parent=0
    #allocation3 [shape = 'u8[12288]{0}', space=vmem, size = 0x3000, scoped, tag = 'input window, operand 0, single buffered']
    #allocation4 [shape = 's32[1]{0}', space=sflag, size = 0x4, scoped, tag = 'scoped memory for tpu_custom_call.1']
    #allocation5 [shape = 's32[1]{0}', space=sflag, size = 0x4, scoped, tag = 'scoped memory for tpu_custom_call.1']
    #allocation6 [shape = 'u8[24576]{0}', space=vmem, size = 0x6000, scoped, tag = 'input window, operand 2, single buffered']
    #allocation7 [shape = 's32[1]{0}', space=sflag, size = 0x4, scoped, tag = 'scoped memory for tpu_custom_call.1']
    #allocation8 [shape = 'u8[32768]{0}', space=vmem, size = 0x8000, scoped, tag = 'input window, operand 3, single buffered']
    #allocation9 [shape = 'u8[512]{0}', space=vmem, size = 0x400, scoped, tag = 'output window, operand 0, single buffered']
    %9 = vsyncpa [#allocation4], 0
    %10 = vsyncpa [#allocation7], 0
    %11 = vsyncpa [#allocation5], 0
    // Predicated region
    $region2: #{tpu_custom_call.1} parent=1 // pred_check
      _
    $region3: #{tpu_custom_call.1} parent=1 // pred_check_branch
      %13 = sbr.rel (0) target = $region5
    $region4: #{tpu_custom_call.1} parent=1 // pred_region
      %s15 = ssub.s32 384, 384
      %16 = vsyncadd [#allocation4], %s15
      %s18 = sshll.u32 [#allocation3], 4
      %s19 = int_to_ptr.vmem [resolvable:$true] %s18
      %21 = dma.hbm_to_vmem [thread:$0]  %s0, 384, %s19, [#allocation4]
    $region5: #{tpu_custom_call.1} parent=1 // pred_fallthru
      _
    // Predicated region
    $region6: #{tpu_custom_call.1} parent=1 // pred_check
      _
    $region7: #{tpu_custom_call.1} parent=1 // pred_check_branch
      %23 = sbr.rel (0) target = $region9
    $region8: #{tpu_custom_call.1} parent=1 // pred_region
      _
    $region9: #{tpu_custom_call.1} parent=1 // pred_fallthru
      _
    // Predicated region
    $region10: #{tpu_custom_call.1} parent=1 // pred_check
      _
    $region11: #{tpu_custom_call.1} parent=1 // pred_check_branch
      %25 = sbr.rel (0) target = $region13
    $region12: #{tpu_custom_call.1} parent=1 // pred_region
      %s27 = ssub.s32 768, 768
      %28 = vsyncadd [#allocation7], %s27
      %s29 = sshll.u32 [#allocation6], 4
      %s30 = int_to_ptr.vmem [resolvable:$true] %s29
      %35 = dma.hbm_to_vmem [thread:$0]  %s2, 768, %s30, [#allocation7], 128, 128, 8
    $region13: #{tpu_custom_call.1} parent=1 // pred_fallthru
      _
    // Predicated region
    $region14: #{tpu_custom_call.1} parent=1 // pred_check
      _
    $region15: #{tpu_custom_call.1} parent=1 // pred_check_branch
      %37 = sbr.rel (0) target = $region17
    $region16: #{tpu_custom_call.1} parent=1 // pred_region
      %s39 = ssub.s32 1024, 1024
      %40 = vsyncadd [#allocation7], %s39
      %s41 = sshll.u32 [#allocation8], 4
      %s42 = int_to_ptr.vmem [resolvable:$true] %s41
      %47 = dma.hbm_to_vmem [thread:$0]  %s3, 1024, %s42, [#allocation7], 512, 512, 32
    $region17: #{tpu_custom_call.1} parent=1 // pred_fallthru
      _
    // Predicated region
    $region18: #{tpu_custom_call.1} parent=1 // pred_check
      _
    $region19: #{tpu_custom_call.1} parent=1 // pred_check_branch
      %49 = sbr.rel (0) target = $region21
    $region20: #{tpu_custom_call.1} parent=1 // pred_region
      %50 = dma.done [#allocation4], 384
    $region21: #{tpu_custom_call.1} parent=1 // pred_fallthru
      _
    // Predicated region
    $region22: #{tpu_custom_call.1} parent=1 // pred_check
      _
    $region23: #{tpu_custom_call.1} parent=1 // pred_check_branch
      %52 = sbr.rel (0) target = $region25
    $region24: #{tpu_custom_call.1} parent=1 // pred_region
      %53 = dma.done [#allocation7], 768
    $region25: #{tpu_custom_call.1} parent=1 // pred_fallthru
      _
    // Predicated region
    $region26: #{tpu_custom_call.1} parent=1 // pred_check
      _
    $region27: #{tpu_custom_call.1} parent=1 // pred_check_branch
      %55 = sbr.rel (0) target = $region29
    $region28: #{tpu_custom_call.1} parent=1 // pred_region
      %56 = dma.done [#allocation7], 1024
    $region29: #{tpu_custom_call.1} parent=1 // pred_fallthru
      _
    %v57 = vld [vmem:[#allocation6] sm:$0xff]
    %v58 = vld [vmem:[#allocation6 + $0x8] sm:$0xff]
    %v59 = vld [vmem:[#allocation6 + $0x10] sm:$0xff]
    %v60 = vld [vmem:[#allocation6 + $0x18] sm:$0xff]
    %v61 = vld [vmem:[#allocation6 + $0x20] sm:$0xff]
    %v62 = vld [vmem:[#allocation6 + $0x28] sm:$0x1]
    %v63 = vld [vmem:[#allocation3] sm:$0xff]
    %v64 = vld [vmem:[#allocation3 + $0x8] sm:$0xff]
    %v65 = vld [vmem:[#allocation3 + $0x10] sm:$0xf]
    %v66 = vld [vmem:[#allocation8] ss:$8 sm:$0xf]
    %v68 = vlaneseq
    %v69 = vshrl.u32 %v68, 7
    %v70 = vsub.s32 0, %v69
    %v71 = vrot.slane %v66, %v70
    %v72 = vlaneseq
    %v73 = vshrl.u32 %v72, 7
    %v74 = vsub.s32 1, %v73
    %v75 = vrot.slane %v66, %v74
    %v76 = vlaneseq
    %v77 = vshrl.u32 %v76, 7
    %v78 = vsub.s32 2, %v77
    %v79 = vrot.slane %v66, %v78
    %v80 = vlaneseq
    %v81 = vshrl.u32 %v80, 7
    %v82 = vsub.s32 3, %v81
    %v83 = vrot.slane %v66, %v82
    %v84 = vcombine.low %v71, %v75
    %v85 = vcombine.low %v79, %v83
    %86 = vrot.lane.b32.xlu0 %v84, 111
    %v87 = vpop.permute.xlu0 %86
    %88 = vrot.lane.b32.xlu0 %v85, 111
    %v89 = vpop.permute.xlu0 %88
    %v90 = vrot.slane %v87, 4
    %v91 = vrot.slane %v89, 4
    %vm92 = vcmask 908288
    %v93 = vsel %vm92, %v90, %v87
    %vm94 = vcmask 1043456
    %v95 = vsel %vm94, %v90, %v91
    %v96 = vsel %vm92, %v95, %v89
    %v100 = vmul.f32 %v63, %v93
    %v101 = vmul.f32 %v64, %v96
    %v102 = vmul.f32 %v65, %v91
    %v106 = vcombine.high %v100, %v100
    %v107 = vcombine.high %v101, %v101
    %108 = vrot.lane.b32.xlu0 %v100, 17
    %v109 = vpop.permute.xlu0 %108
    %110 = vrot.lane.b32.xlu0 %v106, 17
    %v111 = vpop.permute.xlu0 %110
    %112 = vrot.lane.b32.xlu0 %v101, 17
    %v113 = vpop.permute.xlu0 %112
    %114 = vrot.lane.b32.xlu0 %v107, 17
    %v115 = vpop.permute.xlu0 %114
    %116 = vrot.lane.b32.xlu0 %v102, 17
    %v117 = vpop.permute.xlu0 %116
    %vm118 = vcmask 138240
    %v119 = vsel %vm118, %v109, %v111
    %v120 = vsel %vm118, %v111, %v113
    %v121 = vsel %vm118, %v113, %v115
    %v122 = vsel %vm118, %v115, %v117
    %127 = vst [vmem:[#allocation2] sm:$0xf] %v119
    %128 = vst [vmem:[#allocation2 + $0x8] sm:$0xf] %v120
    %129 = vst [vmem:[#allocation2 + $0x10] sm:$0xf] %v121
    %130 = vst [vmem:[#allocation2 + $0x18] sm:$0xf] %v122
    %v131 = vld [vmem:[#allocation3] sm:$0xff]
    %v132 = vld [vmem:[#allocation3 + $0x8] sm:$0xff]
    %v133 = vld [vmem:[#allocation3 + $0x10] sm:$0xf]
    %s134 = scalar_lea.vmem [#allocation8], 1
    %v135 = vld [vmem:[%s134] ss:$8 sm:$0xf]
    %v137 = vlaneseq
    %v138 = vshrl.u32 %v137, 7
    %v139 = vsub.s32 0, %v138
    %v140 = vrot.slane %v135, %v139
    %v141 = vlaneseq
    %v142 = vshrl.u32 %v141, 7
    %v143 = vsub.s32 1, %v142
    %v144 = vrot.slane %v135, %v143
    %v145 = vlaneseq
    %v146 = vshrl.u32 %v145, 7
    %v147 = vsub.s32 2, %v146
    %v148 = vrot.slane %v135, %v147
    %v149 = vlaneseq
    %v150 = vshrl.u32 %v149, 7
    %v151 = vsub.s32 3, %v150
    %v152 = vrot.slane %v135, %v151
    %v153 = vcombine.low %v140, %v144
    %v154 = vcombine.low %v148, %v152
    %155 = vrot.lane.b32.xlu0 %v153, 112
    %v156 = vpop.permute.xlu0 %155
    %157 = vrot.lane.b32.xlu0 %v154, 112
    %v158 = vpop.permute.xlu0 %157
    %v159 = vrot.slane %v156, 4
    %v160 = vrot.slane %v158, 4
    %vm161 = vcmask 916480
    %v162 = vsel %vm161, %v159, %v156
    %v163 = vsel %vm94, %v159, %v160
    %v164 = vsel %vm161, %v163, %v158
    %v168 = vmul.f32 %v131, %v162
    %v169 = vmul.f32 %v132, %v164
    %v170 = vmul.f32 %v133, %v160
    %v174 = vcombine.low %v168, %v168
    %v175 = vcombine.low %v169, %v169
    %v176 = vcombine.low %v170, %v170
    %177 = vrot.lane.b32.xlu0 %v174, 16
    %v178 = vpop.permute.xlu0 %177
    %179 = vrot.lane.b32.xlu0 %v168, 16
    %v180 = vpop.permute.xlu0 %179
    %181 = vrot.lane.b32.xlu0 %v175, 16
    %v182 = vpop.permute.xlu0 %181
    %183 = vrot.lane.b32.xlu0 %v169, 16
    %v184 = vpop.permute.xlu0 %183
    %185 = vrot.lane.b32.xlu0 %v176, 16
    %v186 = vpop.permute.xlu0 %185
    %vm187 = vcmask 130048
    %v188 = vsel %vm187, %v178, %v180
    %v189 = vsel %vm187, %v180, %v182
    %v190 = vsel %vm187, %v182, %v184
    %v191 = vsel %vm187, %v184, %v186
    %196 = vst [vmem:[#allocation2] sm:$0xf0] %v188
    %197 = vst [vmem:[#allocation2 + $0x8] sm:$0xf0] %v189
    %198 = vst [vmem:[#allocation2 + $0x10] sm:$0xf0] %v190
    %199 = vst [vmem:[#allocation2 + $0x18] sm:$0xf0] %v191
    %v200 = vld [vmem:[#allocation3] sm:$0xff]
    %v201 = vld [vmem:[#allocation3 + $0x8] sm:$0xff]
    %v202 = vld [vmem:[#allocation3 + $0x10] sm:$0xf]
    %s203 = scalar_lea.vmem [#allocation8], 2
    %v204 = vld [vmem:[%s203] ss:$8 sm:$0xf]
    %v206 = vlaneseq
    %v207 = vshrl.u32 %v206, 7
    %v208 = vsub.s32 0, %v207
    %v209 = vrot.slane %v204, %v208
    %v210 = vlaneseq
    %v211 = vshrl.u32 %v210, 7
    %v212 = vsub.s32 1, %v211
    %v213 = vrot.slane %v204, %v212
    %v214 = vlaneseq
    %v215 = vshrl.u32 %v214, 7
    %v216 = vsub.s32 2, %v215
    %v217 = vrot.slane %v204, %v216
    %v218 = vlaneseq
    %v219 = vshrl.u32 %v218, 7
    %v220 = vsub.s32 3, %v219
    %v221 = vrot.slane %v204, %v220
    %v222 = vcombine.low %v209, %v213
    %v223 = vcombine.low %v217, %v221
    %224 = vrot.lane.b32.xlu0 %v222, 113
    %v225 = vpop.permute.xlu0 %224
    %226 = vrot.lane.b32.xlu0 %v223, 113
    %v227 = vpop.permute.xlu0 %226
    %v228 = vrot.slane %v225, 4
    %v229 = vrot.slane %v227, 4
    %vm230 = vcmask 924672
    %v231 = vsel %vm230, %v228, %v225
    %v232 = vsel %vm94, %v228, %v229
    %v233 = vsel %vm230, %v232, %v227
    %v237 = vmul.f32 %v200, %v231
    %v238 = vmul.f32 %v201, %v233
    %v239 = vmul.f32 %v202, %v229
    %v243 = vcombine.high %v237, %v237
    %v244 = vcombine.high %v238, %v238
    %245 = vrot.lane.b32.xlu0 %v237, 15
    %v246 = vpop.permute.xlu0 %245
    %247 = vrot.lane.b32.xlu0 %v243, 15
    %v248 = vpop.permute.xlu0 %247
    %249 = vrot.lane.b32.xlu0 %v238, 15
    %v250 = vpop.permute.xlu0 %249
    %251 = vrot.lane.b32.xlu0 %v244, 15
    %v252 = vpop.permute.xlu0 %251
    %253 = vrot.lane.b32.xlu0 %v239, 15
    %v254 = vpop.permute.xlu0 %253
    %vm255 = vcmask 121856
    %v256 = vsel %vm255, %v246, %v248
    %v257 = vsel %vm255, %v248, %v250
    %v258 = vsel %vm255, %v250, %v252
    %v259 = vsel %vm255, %v252, %v254
    %264 = vst [vmem:[#allocation2 + $0x20] sm:$0xf] %v256
    %265 = vst [vmem:[#allocation2 + $0x28] sm:$0xf] %v257
    %266 = vst [vmem:[#allocation2 + $0x30] sm:$0xf] %v258
    %267 = vst [vmem:[#allocation2 + $0x38] sm:$0xf] %v259
    %v268 = vld [vmem:[#allocation3] sm:$0xff]
    %v269 = vld [vmem:[#allocation3 + $0x8] sm:$0xff]
    %v270 = vld [vmem:[#allocation3 + $0x10] sm:$0xf]
    %s271 = scalar_lea.vmem [#allocation8], 3
    %v272 = vld [vmem:[%s271] ss:$8 sm:$0xf]
    %v274 = vlaneseq
    %v275 = vshrl.u32 %v274, 7
    %v276 = vsub.s32 0, %v275
    %v277 = vrot.slane %v272, %v276
    %v278 = vlaneseq
    %v279 = vshrl.u32 %v278, 7
    %v280 = vsub.s32 1, %v279
    %v281 = vrot.slane %v272, %v280
    %v282 = vlaneseq
    %v283 = vshrl.u32 %v282, 7
    %v284 = vsub.s32 2, %v283
    %v285 = vrot.slane %v272, %v284
    %v286 = vlaneseq
    %v287 = vshrl.u32 %v286, 7
    %v288 = vsub.s32 3, %v287
    %v289 = vrot.slane %v272, %v288
    %v290 = vcombine.low %v277, %v281
    %v291 = vcombine.low %v285, %v289
    %292 = vrot.lane.b32.xlu0 %v290, 127
    %v293 = vpop.permute.xlu0 %292
    %294 = vrot.lane.b32.xlu0 %v291, 127
    %v295 = vpop.permute.xlu0 %294
    %v296 = vrot.slane %v293, 4
    %v297 = vrot.slane %v295, 4
    %vm298 = vcmask 1039360
    %v299 = vsel %vm298, %v296, %v293
    %v300 = vsel %vm94, %v296, %v297
    %v301 = vsel %vm298, %v300, %v295
    %v305 = vmul.f32 %v268, %v299
    %v306 = vmul.f32 %v269, %v301
    %v307 = vmul.f32 %v270, %v297
    %v311 = vcombine.low %v305, %v305
    %v312 = vcombine.low %v306, %v306
    %v313 = vcombine.low %v307, %v307
    %314 = vrot.lane.b32.xlu0 %v311, 1
    %v315 = vpop.permute.xlu0 %314
    %316 = vrot.lane.b32.xlu0 %v305, 1
    %v317 = vpop.permute.xlu0 %316
    %318 = vrot.lane.b32.xlu0 %v312, 1
    %v319 = vpop.permute.xlu0 %318
    %320 = vrot.lane.b32.xlu0 %v306, 1
    %v321 = vpop.permute.xlu0 %320
    %322 = vrot.lane.b32.xlu0 %v313, 1
    %v323 = vpop.permute.xlu0 %322
    %vm324 = vcmask 7168
    %v325 = vsel %vm324, %v315, %v317
    %v326 = vsel %vm324, %v317, %v319
    %v327 = vsel %vm324, %v319, %v321
    %v328 = vsel %vm324, %v321, %v323
    %333 = vst [vmem:[#allocation2 + $0x20] sm:$0xf0] %v325
    %334 = vst [vmem:[#allocation2 + $0x28] sm:$0xf0] %v326
    %335 = vst [vmem:[#allocation2 + $0x30] sm:$0xf0] %v327
    %336 = vst [vmem:[#allocation2 + $0x38] sm:$0xf0] %v328
    %v337 = vld [vmem:[#allocation3 + $0x4] sm:$0xff]
    %v338 = vld [vmem:[#allocation3 + $0xc] sm:$0xff]
    %v341 = vcombine.high %v337, %v337
    %v342 = vcombine.high %v338, %v338
    %345 = vst [vmem:[#allocation2 + $0x40] sm:$0xf] %v337
    %346 = vst [vmem:[#allocation2 + $0x48] sm:$0xf] %v341
    %347 = vst [vmem:[#allocation2 + $0x50] sm:$0xf] %v338
    %348 = vst [vmem:[#allocation2 + $0x58] sm:$0xf] %v342
    %v349 = vld [vmem:[#allocation3 + $0x4] sm:$0xff]
    %v350 = vld [vmem:[#allocation3 + $0xc] sm:$0xff]
    %v351 = vld [vmem:[#allocation3 + $0x14] sm:$0xf]
    %s352 = scalar_lea.vmem [#allocation8], 5
    %v353 = vld [vmem:[%s352] ss:$8 sm:$0xf]
    %v355 = vlaneseq
    %v356 = vshrl.u32 %v355, 7
    %v357 = vsub.s32 0, %v356
    %v358 = vrot.slane %v353, %v357
    %v359 = vlaneseq
    %v360 = vshrl.u32 %v359, 7
    %v361 = vsub.s32 1, %v360
    %v362 = vrot.slane %v353, %v361
    %v363 = vlaneseq
    %v364 = vshrl.u32 %v363, 7
    %v365 = vsub.s32 2, %v364
    %v366 = vrot.slane %v353, %v365
    %v367 = vlaneseq
    %v368 = vshrl.u32 %v367, 7
    %v369 = vsub.s32 3, %v368
    %v370 = vrot.slane %v353, %v369
    %v371 = vcombine.low %v358, %v362
    %v372 = vcombine.low %v366, %v370
    %373 = vrot.lane.b32.xlu0 %v371, 1
    %v374 = vpop.permute.xlu0 %373
    %375 = vrot.lane.b32.xlu0 %v372, 1
    %v376 = vpop.permute.xlu0 %375
    %v377 = vrot.slane %v374, 4
    %v378 = vrot.slane %v376, 4
    %v379 = vsel %vm324, %v377, %v374
    %v380 = vsel %vm94, %v377, %v378
    %v381 = vsel %vm324, %v380, %v376
    %v385 = vmul.f32 %v349, %v379
    %v386 = vmul.f32 %v350, %v381
    %v387 = vmul.f32 %v351, %v378
    %v391 = vcombine.low %v385, %v385
    %v392 = vcombine.low %v386, %v386
    %v393 = vcombine.low %v387, %v387
    %394 = vrot.lane.b32.xlu0 %v391, 127
    %v395 = vpop.permute.xlu0 %394
    %396 = vrot.lane.b32.xlu0 %v385, 127
    %v397 = vpop.permute.xlu0 %396
    %398 = vrot.lane.b32.xlu0 %v392, 127
    %v399 = vpop.permute.xlu0 %398
    %400 = vrot.lane.b32.xlu0 %v386, 127
    %v401 = vpop.permute.xlu0 %400
    %402 = vrot.lane.b32.xlu0 %v393, 127
    %v403 = vpop.permute.xlu0 %402
    %v404 = vsel %vm298, %v395, %v397
    %v405 = vsel %vm298, %v397, %v399
    %v406 = vsel %vm298, %v399, %v401
    %v407 = vsel %vm298, %v401, %v403
    %412 = vst [vmem:[#allocation2 + $0x40] sm:$0xf0] %v404
    %413 = vst [vmem:[#allocation2 + $0x48] sm:$0xf0] %v405
    %414 = vst [vmem:[#allocation2 + $0x50] sm:$0xf0] %v406
    %415 = vst [vmem:[#allocation2 + $0x58] sm:$0xf0] %v407
    %v416 = vld [vmem:[#allocation3 + $0x4] sm:$0xff]
    %v417 = vld [vmem:[#allocation3 + $0xc] sm:$0xff]
    %v418 = vld [vmem:[#allocation3 + $0x14] sm:$0xf]
    %s419 = scalar_lea.vmem [#allocation8], 6
    %v420 = vld [vmem:[%s419] ss:$8 sm:$0xf]
    %v422 = vlaneseq
    %v423 = vshrl.u32 %v422, 7
    %v424 = vsub.s32 0, %v423
    %v425 = vrot.slane %v420, %v424
    %v426 = vlaneseq
    %v427 = vshrl.u32 %v426, 7
    %v428 = vsub.s32 1, %v427
    %v429 = vrot.slane %v420, %v428
    %v430 = vlaneseq
    %v431 = vshrl.u32 %v430, 7
    %v432 = vsub.s32 2, %v431
    %v433 = vrot.slane %v420, %v432
    %v434 = vlaneseq
    %v435 = vshrl.u32 %v434, 7
    %v436 = vsub.s32 3, %v435
    %v437 = vrot.slane %v420, %v436
    %v438 = vcombine.low %v425, %v429
    %v439 = vcombine.low %v433, %v437
    %440 = vrot.lane.b32.xlu0 %v438, 15
    %v441 = vpop.permute.xlu0 %440
    %442 = vrot.lane.b32.xlu0 %v439, 15
    %v443 = vpop.permute.xlu0 %442
    %v444 = vrot.slane %v441, 4
    %v445 = vrot.slane %v443, 4
    %v446 = vsel %vm255, %v444, %v441
    %v447 = vsel %vm94, %v444, %v445
    %v448 = vsel %vm255, %v447, %v443
    %v452 = vmul.f32 %v416, %v446
    %v453 = vmul.f32 %v417, %v448
    %v454 = vmul.f32 %v418, %v445
    %v458 = vcombine.high %v452, %v452
    %v459 = vcombine.high %v453, %v453
    %460 = vrot.lane.b32.xlu0 %v452, 113
    %v461 = vpop.permute.xlu0 %460
    %462 = vrot.lane.b32.xlu0 %v458, 113
    %v463 = vpop.permute.xlu0 %462
    %464 = vrot.lane.b32.xlu0 %v453, 113
    %v465 = vpop.permute.xlu0 %464
    %466 = vrot.lane.b32.xlu0 %v459, 113
    %v467 = vpop.permute.xlu0 %466
    %468 = vrot.lane.b32.xlu0 %v454, 113
    %v469 = vpop.permute.xlu0 %468
    %v470 = vsel %vm230, %v461, %v463
    %v471 = vsel %vm230, %v463, %v465
    %v472 = vsel %vm230, %v465, %v467
    %v473 = vsel %vm230, %v467, %v469
    %478 = vst [vmem:[#allocation2 + $0x60] sm:$0xf] %v470
    %479 = vst [vmem:[#allocation2 + $0x68] sm:$0xf] %v471
    %480 = vst [vmem:[#allocation2 + $0x70] sm:$0xf] %v472
    %481 = vst [vmem:[#allocation2 + $0x78] sm:$0xf] %v473
    %v482 = vld [vmem:[#allocation3 + $0x4] sm:$0xff]
    %v483 = vld [vmem:[#allocation3 + $0xc] sm:$0xff]
    %v484 = vld [vmem:[#allocation3 + $0x14] sm:$0xf]
    %s485 = scalar_lea.vmem [#allocation8], 7
    %v486 = vld [vmem:[%s485] ss:$8 sm:$0xf]
    %v488 = vlaneseq
    %v489 = vshrl.u32 %v488, 7
    %v490 = vsub.s32 0, %v489
    %v491 = vrot.slane %v486, %v490
    %v492 = vlaneseq
    %v493 = vshrl.u32 %v492, 7
    %v494 = vsub.s32 1, %v493
    %v495 = vrot.slane %v486, %v494
    %v496 = vlaneseq
    %v497 = vshrl.u32 %v496, 7
    %v498 = vsub.s32 2, %v497
    %v499 = vrot.slane %v486, %v498
    %v500 = vlaneseq
    %v501 = vshrl.u32 %v500, 7
    %v502 = vsub.s32 3, %v501
    %v503 = vrot.slane %v486, %v502
    %v504 = vcombine.low %v491, %v495
    %v505 = vcombine.low %v499, %v503
    %506 = vrot.lane.b32.xlu0 %v504, 16
    %v507 = vpop.permute.xlu0 %506
    %508 = vrot.lane.b32.xlu0 %v505, 16
    %v509 = vpop.permute.xlu0 %508
    %v510 = vrot.slane %v507, 4
    %v511 = vrot.slane %v509, 4
    %v512 = vsel %vm187, %v510, %v507
    %v513 = vsel %vm94, %v510, %v511
    %v514 = vsel %vm187, %v513, %v509
    %v518 = vmul.f32 %v482, %v512
    %v519 = vmul.f32 %v483, %v514
    %v520 = vmul.f32 %v484, %v511
    %v524 = vcombine.low %v518, %v518
    %v525 = vcombine.low %v519, %v519
    %v526 = vcombine.low %v520, %v520
    %527 = vrot.lane.b32.xlu0 %v524, 112
    %v528 = vpop.permute.xlu0 %527
    %529 = vrot.lane.b32.xlu0 %v518, 112
    %v530 = vpop.permute.xlu0 %529
    %531 = vrot.lane.b32.xlu0 %v525, 112
    %v532 = vpop.permute.xlu0 %531
    %533 = vrot.lane.b32.xlu0 %v519, 112
    %v534 = vpop.permute.xlu0 %533
    %535 = vrot.lane.b32.xlu0 %v526, 112
    %v536 = vpop.permute.xlu0 %535
    %v537 = vsel %vm161, %v528, %v530
    %v538 = vsel %vm161, %v530, %v532
    %v539 = vsel %vm161, %v532, %v534
    %v540 = vsel %vm161, %v534, %v536
    %545 = vst [vmem:[#allocation2 + $0x60] sm:$0xf0] %v537
    %546 = vst [vmem:[#allocation2 + $0x68] sm:$0xf0] %v538
    %547 = vst [vmem:[#allocation2 + $0x70] sm:$0xf0] %v539
    %548 = vst [vmem:[#allocation2 + $0x78] sm:$0xf0] %v540
    %v549 = vld [vmem:[#allocation3 + $0x4] sm:$0xff]
    %v550 = vld [vmem:[#allocation3 + $0xc] sm:$0xff]
    %v551 = vld [vmem:[#allocation3 + $0x14] sm:$0xf]
    %s552 = scalar_lea.vmem [#allocation8], 32
    %v553 = vld [vmem:[%s552] ss:$8 sm:$0xf]
    %v555 = vlaneseq
    %v556 = vshrl.u32 %v555, 7
    %v557 = vsub.s32 0, %v556
    %v558 = vrot.slane %v553, %v557
    %v559 = vlaneseq
    %v560 = vshrl.u32 %v559, 7
    %v561 = vsub.s32 1, %v560
    %v562 = vrot.slane %v553, %v561
    %v563 = vlaneseq
    %v564 = vshrl.u32 %v563, 7
    %v565 = vsub.s32 2, %v564
    %v566 = vrot.slane %v553, %v565
    %v567 = vlaneseq
    %v568 = vshrl.u32 %v567, 7
    %v569 = vsub.s32 3, %v568
    %v570 = vrot.slane %v553, %v569
    %v571 = vcombine.low %v558, %v562
    %v572 = vcombine.low %v566, %v570
    %573 = vrot.lane.b32.xlu0 %v571, 17
    %v574 = vpop.permute.xlu0 %573
    %575 = vrot.lane.b32.xlu0 %v572, 17
    %v576 = vpop.permute.xlu0 %575
    %v577 = vrot.slane %v574, 4
    %v578 = vrot.slane %v576, 4
    %v579 = vsel %vm118, %v577, %v574
    %v580 = vsel %vm94, %v577, %v578
    %v581 = vsel %vm118, %v580, %v576
    %v585 = vmul.f32 %v549, %v579
    %v586 = vmul.f32 %v550, %v581
    %v587 = vmul.f32 %v551, %v578
    %v591 = vcombine.high %v585, %v585
    %v592 = vcombine.high %v586, %v586
    %593 = vrot.lane.b32.xlu0 %v585, 111
    %v594 = vpop.permute.xlu0 %593
    %595 = vrot.lane.b32.xlu0 %v591, 111
    %v596 = vpop.permute.xlu0 %595
    %597 = vrot.lane.b32.xlu0 %v586, 111
    %v598 = vpop.permute.xlu0 %597
    %599 = vrot.lane.b32.xlu0 %v592, 111
    %v600 = vpop.permute.xlu0 %599
    %601 = vrot.lane.b32.xlu0 %v587, 111
    %v602 = vpop.permute.xlu0 %601
    %v603 = vsel %vm92, %v594, %v596
    %v604 = vsel %vm92, %v596, %v598
    %v605 = vsel %vm92, %v598, %v600
    %v606 = vsel %vm92, %v600, %v602
    %611 = vst [vmem:[#allocation2 + $0x80] sm:$0xf] %v603
    %612 = vst [vmem:[#allocation2 + $0x88] sm:$0xf] %v604
    %613 = vst [vmem:[#allocation2 + $0x90] sm:$0xf] %v605
    %614 = vst [vmem:[#allocation2 + $0x98] sm:$0xf] %v606
    %v615 = vld [vmem:[#allocation2] sm:$0xff]
    %v616 = vld [vmem:[#allocation2 + $0x8] sm:$0xff]
    %v617 = vld [vmem:[#allocation2 + $0x10] sm:$0xff]
    %v618 = vld [vmem:[#allocation2 + $0x18] sm:$0xff]
    %v619 = vld [vmem:[#allocation2 + $0x20] sm:$0xff]
    %v620 = vld [vmem:[#allocation2 + $0x28] sm:$0xff]
    %v621 = vld [vmem:[#allocation2 + $0x30] sm:$0xff]
    %v622 = vld [vmem:[#allocation2 + $0x38] sm:$0xff]
    %v623 = vld [vmem:[#allocation2 + $0x40] sm:$0xff]
    %v624 = vld [vmem:[#allocation2 + $0x48] sm:$0xff]
    %v625 = vld [vmem:[#allocation2 + $0x50] sm:$0xff]
    %v626 = vld [vmem:[#allocation2 + $0x58] sm:$0xff]
    %v627 = vld [vmem:[#allocation2 + $0x60] sm:$0xff]
    %v628 = vld [vmem:[#allocation2 + $0x68] sm:$0xff]
    %v629 = vld [vmem:[#allocation2 + $0x70] sm:$0xff]
    %v630 = vld [vmem:[#allocation2 + $0x78] sm:$0xff]
    %v631 = vld [vmem:[#allocation2 + $0x80] sm:$0xf]
    %v632 = vld [vmem:[#allocation2 + $0x88] sm:$0xf]
    %v633 = vld [vmem:[#allocation2 + $0x90] sm:$0xf]
    %v634 = vld [vmem:[#allocation2 + $0x98] sm:$0xf]
    %636 = vset.pattern.permute.xlu0 36
    %637 = vperm.xlu0 %636, %v57
    %v638 = vpop.permute.xlu0 %637
    %vm640 = vcmask 293888
    %v641 = vsel %vm640, %v57, 0
    %v644 = vsel %vm94, %v631, 0
    %v647 = vsel %vm94, %v632, 0
    %v650 = vsel %vm94, %v633, 0
    %v653 = vsel %vm94, %v634, 0
    %655 = vmatprep.subr.mxu0 0.0
    %656 = vmatpush1.msra.mxu0 0.0
    %657 = vmatprep.subr.mxu0 0.0
    %658 = vmatpush1.msra.mxu0 0.0
    %659 = vmatprep.subr.mxu0 0.0
    %660 = vmatpush1.msra.mxu0 0.0
    %661 = vmatprep.subr.mxu0 0.0
    %662 = vmatpush1.msra.mxu0 0.0
    %663 = vmatprep.subr.mxu0 0.0
    %664 = vmatpush1.msra.mxu0 0.0
    %665 = vmatprep.subr.mxu0 0.0
    %666 = vmatpush1.msra.mxu0 0.0
    %667 = vmatprep.subr.mxu0 0.0
    %668 = vmatpush1.msra.mxu0 0.0
    %669 = vmatprep.subr.mxu0 0.0
    %670 = vmatpush1.msra.mxu0 0.0
    %671 = vmatprep.subr.mxu0 0.0
    %672 = vmatpush1.msra.mxu0 0.0
    %673 = vmatprep.subr.mxu0 0.0
    %674 = vmatpush1.msra.mxu0 0.0
    %675 = vmatprep.subr.mxu0 0.0
    %676 = vmatpush1.msra.mxu0 0.0
    %677 = vmatprep.subr.mxu0 %v647
    %678 = vmatpush1.msra.mxu0 %v644
    %679 = vmatprep.subr.mxu0 %v628
    %680 = vmatpush1.msra.mxu0 %v627
    %681 = vmatprep.subr.mxu0 %v624
    %682 = vmatpush1.msra.mxu0 %v623
    %683 = vmatprep.subr.mxu0 %v620
    %684 = vmatpush1.msra.mxu0 %v619
    %685 = vmatprep.subr.mxu0 %v616
    %686 = vmatpush1.msra.mxu0 %v615
    %687 = vmatprep.subr.mxu0 0.0
    %688 = vmatpush2.msra.mxu0 0.0
    %689 = vmatprep.subr.mxu0 0.0
    %690 = vmatpush2.msra.mxu0 0.0
    %691 = vmatprep.subr.mxu0 0.0
    %692 = vmatpush2.msra.mxu0 0.0
    %693 = vmatprep.subr.mxu0 0.0
    %694 = vmatpush2.msra.mxu0 0.0
    %695 = vmatprep.subr.mxu0 0.0
    %696 = vmatpush2.msra.mxu0 0.0
    %697 = vmatprep.subr.mxu0 0.0
    %698 = vmatpush2.msra.mxu0 0.0
    %699 = vmatprep.subr.mxu0 0.0
    %700 = vmatpush2.msra.mxu0 0.0
    %701 = vmatprep.subr.mxu0 0.0
    %702 = vmatpush2.msra.mxu0 0.0
    %703 = vmatprep.subr.mxu0 0.0
    %704 = vmatpush2.msra.mxu0 0.0
    %705 = vmatprep.subr.mxu0 0.0
    %706 = vmatpush2.msra.mxu0 0.0
    %707 = vmatprep.subr.mxu0 0.0
    %708 = vmatpush2.msra.mxu0 0.0
    %709 = vmatprep.subr.mxu0 0.0
    %710 = vmatpush2.msra.mxu0 0.0
    %711 = vmatprep.subr.mxu0 0.0
    %712 = vmatpush2.msra.mxu0 0.0
    %713 = vmatprep.subr.mxu0 0.0
    %714 = vmatpush2.msra.mxu0 0.0
    %715 = vmatprep.subr.mxu0 0.0
    %716 = vmatpush2.msra.mxu0 0.0
    %717 = vmatprep.subr.mxu0 0.0
    %718 = vmatpush2.msra.mxu0 0.0
    %719 = vmatprep.mubr.f32.mxu0 0.0
    %720 = vmatmul.mubr.f32.gmra.mxu0 %v641
    %v721 = vpop.f32.mrf.mxu0
    %v722 = vadd.f32 %v638, %v721
    %v723 = vpop.f32.mrf.mxu0
    %v724 = vadd.f32 %v638, %v723
    %725 = vdwg.mxu0
    %726 = vmatprep.subr.mxu0 0.0
    %727 = vmatpush1.msra.mxu0 0.0
    %728 = vmatprep.subr.mxu0 0.0
    %729 = vmatpush1.msra.mxu0 0.0
    %730 = vmatprep.subr.mxu0 0.0
    %731 = vmatpush1.msra.mxu0 0.0
    %732 = vmatprep.subr.mxu0 0.0
    %733 = vmatpush1.msra.mxu0 0.0
    %734 = vmatprep.subr.mxu0 0.0
    %735 = vmatpush1.msra.mxu0 0.0
    %736 = vmatprep.subr.mxu0 0.0
    %737 = vmatpush1.msra.mxu0 0.0
    %738 = vmatprep.subr.mxu0 0.0
    %739 = vmatpush1.msra.mxu0 0.0
    %740 = vmatprep.subr.mxu0 0.0
    %741 = vmatpush1.msra.mxu0 0.0
    %742 = vmatprep.subr.mxu0 0.0
    %743 = vmatpush1.msra.mxu0 0.0
    %744 = vmatprep.subr.mxu0 0.0
    %745 = vmatpush1.msra.mxu0 0.0
    %746 = vmatprep.subr.mxu0 0.0
    %747 = vmatpush1.msra.mxu0 0.0
    %748 = vmatprep.subr.mxu0 %v653
    %749 = vmatpush1.msra.mxu0 %v650
    %750 = vmatprep.subr.mxu0 %v630
    %751 = vmatpush1.msra.mxu0 %v629
    %752 = vmatprep.subr.mxu0 %v626
    %753 = vmatpush1.msra.mxu0 %v625
    %754 = vmatprep.subr.mxu0 %v622
    %755 = vmatpush1.msra.mxu0 %v621
    %756 = vmatprep.subr.mxu0 %v618
    %757 = vmatpush1.msra.mxu0 %v617
    %758 = vmatprep.subr.mxu0 0.0
    %759 = vmatpush2.msra.mxu0 0.0
    %760 = vmatprep.subr.mxu0 0.0
    %761 = vmatpush2.msra.mxu0 0.0
    %762 = vmatprep.subr.mxu0 0.0
    %763 = vmatpush2.msra.mxu0 0.0
    %764 = vmatprep.subr.mxu0 0.0
    %765 = vmatpush2.msra.mxu0 0.0
    %766 = vmatprep.subr.mxu0 0.0
    %767 = vmatpush2.msra.mxu0 0.0
    %768 = vmatprep.subr.mxu0 0.0
    %769 = vmatpush2.msra.mxu0 0.0
    %770 = vmatprep.subr.mxu0 0.0
    %771 = vmatpush2.msra.mxu0 0.0
    %772 = vmatprep.subr.mxu0 0.0
    %773 = vmatpush2.msra.mxu0 0.0
    %774 = vmatprep.subr.mxu0 0.0
    %775 = vmatpush2.msra.mxu0 0.0
    %776 = vmatprep.subr.mxu0 0.0
    %777 = vmatpush2.msra.mxu0 0.0
    %778 = vmatprep.subr.mxu0 0.0
    %779 = vmatpush2.msra.mxu0 0.0
    %780 = vmatprep.subr.mxu0 0.0
    %781 = vmatpush2.msra.mxu0 0.0
    %782 = vmatprep.subr.mxu0 0.0
    %783 = vmatpush2.msra.mxu0 0.0
    %784 = vmatprep.subr.mxu0 0.0
    %785 = vmatpush2.msra.mxu0 0.0
    %786 = vmatprep.subr.mxu0 0.0
    %787 = vmatpush2.msra.mxu0 0.0
    %788 = vmatprep.subr.mxu0 0.0
    %789 = vmatpush2.msra.mxu0 0.0
    %790 = vmatprep.mubr.f32.mxu0 0.0
    %791 = vmatmul.mubr.f32.gmra.mxu0 %v641
    %v792 = vpop.f32.mrf.mxu0
    %v793 = vadd.f32 %v638, %v792
    %v794 = vpop.f32.mrf.mxu0
    %v795 = vadd.f32 %v638, %v794
    %796 = vdwg.mxu0
    %v797 = vmax.f32 %v722, 0.0
    %v798 = vmax.f32 %v724, 0.0
    %v799 = vmax.f32 %v793, 0.0
    %v800 = vmax.f32 %v795, 0.0
    %v801 = vadd.f32 %v797, %v798
    %802 = vadd.xlane.f32.xlu0 %v801
    %v803 = vpop.xlane.xlu0 %802
    %v804 = vadd.f32 %v799, %v800
    %805 = vadd.xlane.f32.xlu0 %v804
    %v806 = vpop.xlane.xlu0 %805
    %v807 = vsel %vm324, %v803, %v806
    %v808 = vmul.f32 %v807, 0.00390625
    %v809 = vld [vmem:[%s1] sm:$0x1f]
    %814 = vrot.lane.b32.xlu0 %v58, 120
    %v815 = vpop.permute.xlu0 %814
    %816 = vrot.lane.b32.xlu0 %v59, 120
    %v817 = vpop.permute.xlu0 %816
    %818 = vrot.lane.b32.xlu0 %v60, 120
    %v819 = vpop.permute.xlu0 %818
    %820 = vrot.lane.b32.xlu0 %v61, 120
    %v821 = vpop.permute.xlu0 %820
    %vm822 = vcmask 39936
    %v823 = vsel %vm822, %v815, 0
    %v825 = vsel %vm822, %v817, 0
    %v827 = vsel %vm822, %v819, 0
    %v829 = vsel %vm822, %v821, 0
    %vm831 = vcmask 1044480
    %v833 = vsel %vm831, %v809, 0
    %835 = vmatprep.subr.mxu0 0.0
    %836 = vmatpush1.msra.mxu0 0.0
    %837 = vmatprep.subr.mxu0 0.0
    %838 = vmatpush1.msra.mxu0 0.0
    %839 = vmatprep.subr.mxu0 0.0
    %840 = vmatpush1.msra.mxu0 0.0
    %841 = vmatprep.subr.mxu0 0.0
    %842 = vmatpush1.msra.mxu0 0.0
    %843 = vmatprep.subr.mxu0 0.0
    %844 = vmatpush1.msra.mxu0 0.0
    %845 = vmatprep.subr.mxu0 0.0
    %846 = vmatpush1.msra.mxu0 0.0
    %847 = vmatprep.subr.mxu0 0.0
    %848 = vmatpush1.msra.mxu0 0.0
    %849 = vmatprep.subr.mxu0 0.0
    %850 = vmatpush1.msra.mxu0 0.0
    %851 = vmatprep.subr.mxu0 0.0
    %852 = vmatpush1.msra.mxu0 0.0
    %853 = vmatprep.subr.mxu0 0.0
    %854 = vmatpush1.msra.mxu0 0.0
    %855 = vmatprep.subr.mxu0 0.0
    %856 = vmatpush1.msra.mxu0 0.0
    %857 = vmatprep.subr.mxu0 0.0
    %858 = vmatpush1.msra.mxu0 0.0
    %859 = vmatprep.subr.mxu0 0.0
    %860 = vmatpush1.msra.mxu0 0.0
    %861 = vmatprep.subr.mxu0 0.0
    %862 = vmatpush1.msra.mxu0 0.0
    %863 = vmatprep.subr.mxu0 0.0
    %864 = vmatpush1.msra.mxu0 0.0
    %865 = vmatprep.subr.mxu0 0.0
    %866 = vmatpush1.msra.mxu0 %v833
    %867 = vmatprep.subr.mxu0 0.0
    %868 = vmatpush2.msra.mxu0 0.0
    %869 = vmatprep.subr.mxu0 0.0
    %870 = vmatpush2.msra.mxu0 0.0
    %871 = vmatprep.subr.mxu0 0.0
    %872 = vmatpush2.msra.mxu0 0.0
    %873 = vmatprep.subr.mxu0 0.0
    %874 = vmatpush2.msra.mxu0 0.0
    %875 = vmatprep.subr.mxu0 0.0
    %876 = vmatpush2.msra.mxu0 0.0
    %877 = vmatprep.subr.mxu0 0.0
    %878 = vmatpush2.msra.mxu0 0.0
    %879 = vmatprep.subr.mxu0 0.0
    %880 = vmatpush2.msra.mxu0 0.0
    %881 = vmatprep.subr.mxu0 0.0
    %882 = vmatpush2.msra.mxu0 0.0
    %883 = vmatprep.subr.mxu0 0.0
    %884 = vmatpush2.msra.mxu0 0.0
    %885 = vmatprep.subr.mxu0 0.0
    %886 = vmatpush2.msra.mxu0 0.0
    %887 = vmatprep.subr.mxu0 0.0
    %888 = vmatpush2.msra.mxu0 0.0
    %889 = vmatprep.subr.mxu0 0.0
    %890 = vmatpush2.msra.mxu0 0.0
    %891 = vmatprep.subr.mxu0 0.0
    %892 = vmatpush2.msra.mxu0 0.0
    %893 = vmatprep.subr.mxu0 0.0
    %894 = vmatpush2.msra.mxu0 0.0
    %895 = vmatprep.subr.mxu0 0.0
    %896 = vmatpush2.msra.mxu0 0.0
    %897 = vmatprep.subr.mxu0 0.0
    %898 = vmatpush2.msra.mxu0 0.0
    %899 = vmatprep.mubr.f32.mxu0 0.0
    %900 = vmatmul.mubr.f32.gmra.mxu0 %v823
    %v901 = vpop.f32.mrf.mxu0
    %v902 = vadd.f32 0.0, %v901
    %v903 = vpop.f32.mrf.mxu0
    %904 = vmatprep.mubr.f32.mxu0 0.0
    %905 = vmatmul.mubr.f32.gmra.mxu0 %v825
    %v906 = vpop.f32.mrf.mxu0
    %v907 = vadd.f32 0.0, %v906
    %v908 = vpop.f32.mrf.mxu0
    %909 = vmatprep.mubr.f32.mxu0 0.0
    %910 = vmatmul.mubr.f32.gmra.mxu0 %v827
    %v911 = vpop.f32.mrf.mxu0
    %v912 = vadd.f32 0.0, %v911
    %v913 = vpop.f32.mrf.mxu0
    %914 = vmatprep.mubr.f32.mxu0 0.0
    %915 = vmatmul.mubr.f32.gmra.mxu0 %v829
    %v916 = vpop.f32.mrf.mxu0
    %v917 = vadd.f32 0.0, %v916
    %v918 = vpop.f32.mrf.mxu0
    %919 = vdwg.mxu0
    %vm920 = vcmask 64512
    %v921 = vsel %vm920, %v58, 0
    %v923 = vsel %vm920, %v59, 0
    %v925 = vsel %vm920, %v60, 0
    %v927 = vsel %vm920, %v61, 0
    %929 = vmatprep.subr.mxu0 0.0
    %930 = vmatpush1.msra.mxu0 0.0
    %931 = vmatprep.subr.mxu0 0.0
    %932 = vmatpush1.msra.mxu0 0.0
    %933 = vmatprep.subr.mxu0 0.0
    %934 = vmatpush1.msra.mxu0 0.0
    %935 = vmatprep.subr.mxu0 0.0
    %936 = vmatpush1.msra.mxu0 0.0
    %937 = vmatprep.subr.mxu0 0.0
    %938 = vmatpush1.msra.mxu0 0.0
    %939 = vmatprep.subr.mxu0 0.0
    %940 = vmatpush1.msra.mxu0 0.0
    %941 = vmatprep.subr.mxu0 0.0
    %942 = vmatpush1.msra.mxu0 0.0
    %943 = vmatprep.subr.mxu0 0.0
    %944 = vmatpush1.msra.mxu0 0.0
    %945 = vmatprep.subr.mxu0 0.0
    %946 = vmatpush1.msra.mxu0 0.0
    %947 = vmatprep.subr.mxu0 0.0
    %948 = vmatpush1.msra.mxu0 0.0
    %949 = vmatprep.subr.mxu0 0.0
    %950 = vmatpush1.msra.mxu0 0.0
    %951 = vmatprep.subr.mxu0 0.0
    %952 = vmatpush1.msra.mxu0 0.0
    %953 = vmatprep.subr.mxu0 0.0
    %954 = vmatpush1.msra.mxu0 0.0
    %955 = vmatprep.subr.mxu0 0.0
    %956 = vmatpush1.msra.mxu0 0.0
    %957 = vmatprep.subr.mxu0 0.0
    %958 = vmatpush1.msra.mxu0 0.0
    %959 = vmatprep.subr.mxu0 0.0
    %960 = vmatpush1.msra.mxu0 %v808
    %961 = vmatprep.subr.mxu0 0.0
    %962 = vmatpush2.msra.mxu0 0.0
    %963 = vmatprep.subr.mxu0 0.0
    %964 = vmatpush2.msra.mxu0 0.0
    %965 = vmatprep.subr.mxu0 0.0
    %966 = vmatpush2.msra.mxu0 0.0
    %967 = vmatprep.subr.mxu0 0.0
    %968 = vmatpush2.msra.mxu0 0.0
    %969 = vmatprep.subr.mxu0 0.0
    %970 = vmatpush2.msra.mxu0 0.0
    %971 = vmatprep.subr.mxu0 0.0
    %972 = vmatpush2.msra.mxu0 0.0
    %973 = vmatprep.subr.mxu0 0.0
    %974 = vmatpush2.msra.mxu0 0.0
    %975 = vmatprep.subr.mxu0 0.0
    %976 = vmatpush2.msra.mxu0 0.0
    %977 = vmatprep.subr.mxu0 0.0
    %978 = vmatpush2.msra.mxu0 0.0
    %979 = vmatprep.subr.mxu0 0.0
    %980 = vmatpush2.msra.mxu0 0.0
    %981 = vmatprep.subr.mxu0 0.0
    %982 = vmatpush2.msra.mxu0 0.0
    %983 = vmatprep.subr.mxu0 0.0
    %984 = vmatpush2.msra.mxu0 0.0
    %985 = vmatprep.subr.mxu0 0.0
    %986 = vmatpush2.msra.mxu0 0.0
    %987 = vmatprep.subr.mxu0 0.0
    %988 = vmatpush2.msra.mxu0 0.0
    %989 = vmatprep.subr.mxu0 0.0
    %990 = vmatpush2.msra.mxu0 0.0
    %991 = vmatprep.subr.mxu0 0.0
    %992 = vmatpush2.msra.mxu0 0.0
    %993 = vmatprep.mubr.f32.mxu0 0.0
    %994 = vmatmul.mubr.f32.gmra.mxu0 %v921
    %v995 = vpop.f32.mrf.mxu0
    %v996 = vadd.f32 %v902, %v995
    %v997 = vpop.f32.mrf.mxu0
    %998 = vmatprep.mubr.f32.mxu0 0.0
    %999 = vmatmul.mubr.f32.gmra.mxu0 %v923
    %v1000 = vpop.f32.mrf.mxu0
    %v1001 = vadd.f32 %v907, %v1000
    %v1002 = vpop.f32.mrf.mxu0
    %1003 = vmatprep.mubr.f32.mxu0 0.0
    %1004 = vmatmul.mubr.f32.gmra.mxu0 %v925
    %v1005 = vpop.f32.mrf.mxu0
    %v1006 = vadd.f32 %v912, %v1005
    %v1007 = vpop.f32.mrf.mxu0
    %1008 = vmatprep.mubr.f32.mxu0 0.0
    %1009 = vmatmul.mubr.f32.gmra.mxu0 %v927
    %v1010 = vpop.f32.mrf.mxu0
    %v1011 = vadd.f32 %v917, %v1010
    %v1012 = vpop.f32.mrf.mxu0
    %1013 = vdwg.mxu0
    %1014 = vset.pattern.permute.xlu0 13
    %1015 = vperm.xlu0 %1014, %v58
    %v1016 = vpop.permute.xlu0 %1015
    %1018 = vset.pattern.permute.xlu0 13
    %1019 = vperm.xlu0 %1018, %v59
    %v1020 = vpop.permute.xlu0 %1019
    %1022 = vset.pattern.permute.xlu0 13
    %1023 = vperm.xlu0 %1022, %v60
    %v1024 = vpop.permute.xlu0 %1023
    %1026 = vset.pattern.permute.xlu0 13
    %1027 = vperm.xlu0 %1026, %v61
    %v1028 = vpop.permute.xlu0 %1027
    %v1030 = vadd.f32 %v996, %v1016
    %v1031 = vadd.f32 %v1001, %v1020
    %v1032 = vadd.f32 %v1006, %v1024
    %v1033 = vadd.f32 %v1011, %v1028
    %v1034 = vmax.f32 %v1030, 0.0
    %v1035 = vmax.f32 %v1031, 0.0
    %v1036 = vmax.f32 %v1032, 0.0
    %v1037 = vmax.f32 %v1033, 0.0
    %1038 = vset.pattern.permute.xlu0 14
    %1039 = vperm.xlu0 %1038, %v58
    %v1040 = vpop.permute.xlu0 %1039
    %1042 = vset.pattern.permute.xlu0 14
    %1043 = vperm.xlu0 %1042, %v59
    %v1044 = vpop.permute.xlu0 %1043
    %1046 = vset.pattern.permute.xlu0 14
    %1047 = vperm.xlu0 %1046, %v60
    %v1048 = vpop.permute.xlu0 %1047
    %1050 = vset.pattern.permute.xlu0 14
    %1051 = vperm.xlu0 %1050, %v61
    %v1052 = vpop.permute.xlu0 %1051
    %v1054 = vmul.f32 %v1034, %v1040
    %v1055 = vmul.f32 %v1035, %v1044
    %v1056 = vmul.f32 %v1036, %v1048
    %v1057 = vmul.f32 %v1037, %v1052
    %vm1058 = vcmask 15360
    %v1059 = vsel %vm1058, %v1054, 0.0
    %v1060 = vsel %vm1058, %v1055, 0.0
    %v1061 = vadd.f32 %v1059, %v1060
    %v1062 = vsel %vm1058, %v1056, 0.0
    %v1063 = vadd.f32 %v1061, %v1062
    %v1064 = vsel %vm1058, %v1057, 0.0
    %v1065 = vadd.f32 %v1063, %v1064
    %v1066 = vrot.slane %v1065, 4
    %v1067 = vadd.f32 %v1065, %v1066
    %v1068 = vrot.slane %v1067, 2
    %v1069 = vadd.f32 %v1067, %v1068
    %v1070 = vrot.slane %v1069, 1
    %v1071 = vadd.f32 %v1069, %v1070
    %1073 = vset.pattern.permute.xlu0 0
    %1074 = vperm.xlu0 %1073, %v62
    %v1075 = vpop.permute.xlu0 %1074
    %v1077 = vadd.f32 %v1071, %v1075
    %vm1078 = vcmask 8192
    %1079 = vst.msk [vmem:[#allocation9] sm:$0x1] %vm1078, %v1077
    // Predicated region
    $region30: #{tpu_custom_call.1} parent=1 // pred_check
      _
    $region31: #{tpu_custom_call.1} parent=1 // pred_check_branch
      %1081 = sbr.rel (0) target = $region33
    $region32: #{tpu_custom_call.1} parent=1 // pred_region
      %s1083 = ssub.s32 16, 16
      %1084 = vsyncadd [#allocation5], %s1083
      %s1086 = sshll.u32 [#allocation9], 4
      %s1087 = int_to_ptr.vmem [resolvable:$true] %s1086
      %1089 = dma.vmem_to_hbm [thread:$0]  %s1087, 16, %s4, [#allocation5]
    $region33: #{tpu_custom_call.1} parent=1 // pred_fallthru
      _
    // Predicated region
    $region34: #{tpu_custom_call.1} parent=1 // pred_check
      _
    $region35: #{tpu_custom_call.1} parent=1 // pred_check_branch
      %1091 = sbr.rel (0) target = $region37
    $region36: #{tpu_custom_call.1} parent=1 // pred_region
      %1092 = dma.done [#allocation5], 16
    $region37: #{tpu_custom_call.1} parent=1 // pred_fallthru
      _
    %1093 = vsyncpa [#allocation4], 1
    %1094 = vsyncpa [#allocation7], 1
    %1095 = vsyncpa [#allocation5], 1

</llo_original>
